<compile_context>
chip_gen: v6e
topology: v6e:2x2x1
jax: 0.10.0
libtpu: 0.0.40
codegen_flags: <defaults>
</compile_context>

<pallas_src>
import jax
import jax.numpy as jnp
from jax.experimental import pallas as pl
from jax.experimental.pallas import tpu as pltpu

_SUB = 8  # sublane rows per I/O tile (f32 native sublane count)


def _elementwise_resnet_kernel(x_ref, a_ref, b1_ref, w2_ref, b2_ref,
                               w3_ref, b3_ref, o_ref):
    # x_ref: (8, TILE_C) sublane+lane-dense tile of the flattened input.
    x = x_ref[...]                                                   # (8, TC)

    # Layer 1: Linear(1 -> H) fused with the 8-row batching: MXU matmul with
    # A[s*H + j, s] = w1[j], then bias + ReLU on the VPU.
    h = jnp.dot(a_ref[...], x, preferred_element_type=jnp.float32)   # (8H, TC)
    h = jnp.maximum(h + b1_ref[...], 0.0)

    # Layer 2: Linear(H -> H) as one block-diagonal (8H, 8H) MXU matmul.
    h = jnp.dot(w2_ref[...], h, preferred_element_type=jnp.float32)  # (8H, TC)
    h = jnp.maximum(h + b2_ref[...], 0.0)

    # Layer 3: Linear(H -> 1) as a (8, 8H) selector-weighted MXU matmul
    # (keeps the cross-sublane reduce off the VPU/XLU).
    r = jnp.dot(w3_ref[...], h, preferred_element_type=jnp.float32)  # (8, TC)

    # Residual connection: outputs = inputs + residuals (full-width vst).
    o_ref[...] = x + r + b3_ref[...]


def _pick_tile_c(c, cap):
    """Largest multiple-of-128 divisor of c that is <= cap (c is a multiple of 128)."""
    cap = max(128, (cap // 128) * 128)
    best = 128
    t = 128
    limit = min(c, cap)
    while t <= limit:
        if c % t == 0:
            best = t
        t += 128
    return best


def elementwise_resnet(x, params, *, max_tile_lanes=4096):
    """x: arbitrary-shaped array. Returns x + net(x.reshape(-1,1)).reshape(x.shape)."""
    w1, b1, w2, b2, w3, b3 = params
    hidden = w1.shape[1]
    in_shape = x.shape
    in_dtype = x.dtype
    f32 = jnp.float32
    S = _SUB
    sh = S * hidden

    # Fused constant operators (built once per call; tiny).
    eye = jnp.eye(S, dtype=f32)
    a_op = jnp.kron(eye, jnp.asarray(w1, f32).reshape(hidden, 1))        # (8H, 8)
    b1_rep = jnp.tile(jnp.asarray(b1, f32).reshape(hidden, 1), (S, 1))   # (8H, 1)
    w2_bd = jnp.kron(eye, jnp.asarray(w2, f32).T)                        # (8H, 8H)
    b2_rep = jnp.tile(jnp.asarray(b2, f32).reshape(hidden, 1), (S, 1))   # (8H, 1)
    w3_sel = jnp.kron(eye, jnp.asarray(w3, f32).reshape(1, hidden))      # (8, 8H)
    b3_sc = jnp.asarray(b3, f32).reshape(1, 1)                           # (1, 1)

    # Flatten; only pad when N is not a multiple of 8*128 (avoids extra HBM
    # round-trips from pad + tail-slice for typical NCHW sizes).
    x_flat = x.reshape(-1).astype(f32)
    n = x_flat.shape[0]
    chunk = S * 128
    n_pad = n if n % chunk == 0 else pl.cdiv(n, chunk) * chunk
    if n_pad != n:
        x_flat = jnp.pad(x_flat, (0, n_pad - n))
    c = n_pad // S
    tile_c = _pick_tile_c(c, max_tile_lanes)
    grid = (c // tile_c,)

    x_2d = x_flat.reshape(S, c)  # (8, C): sublane-dense, lane-dense

    def lane_map(i):
        return (0, i)

    def const_map(i):
        return (0, 0)

    out_2d = pl.pallas_call(
        _elementwise_resnet_kernel,
        out_shape=jax.ShapeDtypeStruct((S, c), f32),
        grid_spec=pltpu.PrefetchScalarGridSpec(
            num_scalar_prefetch=0,
            grid=grid,
            in_specs=[
                pl.BlockSpec((S, tile_c), lane_map),      # x tile   (8, TC)
                pl.BlockSpec((sh, S), const_map),         # A        (8H, 8)
                pl.BlockSpec((sh, 1), const_map),         # b1_rep   (8H, 1)
                pl.BlockSpec((sh, sh), const_map),        # W2_bd    (8H, 8H)
                pl.BlockSpec((sh, 1), const_map),         # b2_rep   (8H, 1)
                pl.BlockSpec((S, sh), const_map),         # W3_sel   (8, 8H)
                pl.BlockSpec((1, 1), const_map),          # b3       (1, 1)
            ],
            out_specs=pl.BlockSpec((S, tile_c), lane_map),
        ),
        compiler_params=pltpu.CompilerParams(
            dimension_semantics=("parallel",),
            vmem_limit_bytes=32 * 1024 * 1024),
    )(x_2d, a_op, b1_rep, w2_bd, b2_rep, w3_sel, b3_sc)

    out_flat = out_2d.reshape(-1)
    if n_pad != n:
        out_flat = out_flat[:n]
    return out_flat.reshape(in_shape).astype(in_dtype)


def init_params(key, hidden=32):
    """Deterministic init of the scalar MLP: 1 -> hidden -> hidden -> 1."""
    k1, k2, k3, k4, k5, k6 = jax.random.split(key, 6)
    w1 = jax.random.normal(k1, (1, hidden), jnp.float32) * 0.5
    b1 = jax.random.normal(k2, (1, hidden), jnp.float32) * 0.1
    w2 = jax.random.normal(k3, (hidden, hidden), jnp.float32) * (1.0 / jnp.sqrt(hidden))
    b2 = jax.random.normal(k4, (1, hidden), jnp.float32) * 0.1
    w3 = jax.random.normal(k5, (hidden, 1), jnp.float32) * (1.0 / jnp.sqrt(hidden))
    b3 = jax.random.normal(k6, (1, 1), jnp.float32) * 0.1
    return (w1, b1, w2, b2, w3, b3)


def reference(x, params):
    """Pure-JAX reference mirroring the PyTorch forward."""
    w1, b1, w2, b2, w3, b3 = params
    in_shape = x.shape
    h = x.reshape((-1, 1)).astype(jnp.float32)
    h = jnp.maximum(h @ w1 + b1, 0.0)
    h = jnp.maximum(h @ w2 + b2, 0.0)
    r = (h @ w3 + b3).reshape(in_shape)
    return x + r


if __name__ == "__main__":
    key = jax.random.PRNGKey(0)
    kx, kp = jax.random.split(key)

    # NCHW input, as the module is typically applied to image-like tensors.
    x = jax.random.normal(kx, (2, 4, 16, 16), jnp.float32)
    params = init_params(kp, hidden=32)

    out = elementwise_resnet(x, params)
    out = jax.block_until_ready(out)

    ref = reference(x, params)
    assert out.shape == x.shape
    assert out.dtype == x.dtype
    assert jnp.allclose(out, ref, atol=1e-4, rtol=1e-4), "mismatch vs reference"

    print("KERNEL_OK")
</pallas_src>

<mosaic_0001>
module attributes {stable_mosaic.version = 11 : i64} {
  func.func @_elementwise_resnet_kernel(%arg0: i32, %arg1: memref<8x256xf32, #tpu.memory_space<vmem>>, %arg2: memref<256x8xf32, #tpu.memory_space<vmem>>, %arg3: memref<256x1xf32, #tpu.memory_space<vmem>>, %arg4: memref<256x256xf32, #tpu.memory_space<vmem>>, %arg5: memref<256x1xf32, #tpu.memory_space<vmem>>, %arg6: memref<8x256xf32, #tpu.memory_space<vmem>>, %arg7: memref<1x1xf32, #tpu.memory_space<vmem>>, %arg8: memref<8x256xf32, #tpu.memory_space<vmem>>) attributes {dimension_semantics = [#tpu.dimension_semantics<parallel>], iteration_bounds = array<i64: 1>, scalar_prefetch = 0 : i64, scratch_operands = 0 : i64, tpu.core_type = #tpu.core_type<tc>, window_params = [{transform_indices = @transform_0, window_bounds = array<i64: 8, 256>}, {pipeline_mode = #tpu.pipeline_mode<synchronous>, transform_indices = @transform_1, window_bounds = array<i64: 256, 8>}, {pipeline_mode = #tpu.pipeline_mode<synchronous>, transform_indices = @transform_2, window_bounds = array<i64: 256, 1>}, {pipeline_mode = #tpu.pipeline_mode<synchronous>, transform_indices = @transform_3, window_bounds = array<i64: 256, 256>}, {pipeline_mode = #tpu.pipeline_mode<synchronous>, transform_indices = @transform_4, window_bounds = array<i64: 256, 1>}, {pipeline_mode = #tpu.pipeline_mode<synchronous>, transform_indices = @transform_5, window_bounds = array<i64: 8, 256>}, {pipeline_mode = #tpu.pipeline_mode<synchronous>, transform_indices = @transform_6, window_bounds = array<i64: 1, 1>}, {transform_indices = @transform_7, window_bounds = array<i64: 8, 256>}]} {
    %c0 = arith.constant 0 : index
    %c0_0 = arith.constant 0 : index
    %0 = vector.load %arg1[%c0, %c0_0] : memref<8x256xf32, #tpu.memory_space<vmem>>, vector<8x256xf32>
    %c0_1 = arith.constant 0 : index
    %c0_2 = arith.constant 0 : index
    %1 = vector.load %arg2[%c0_1, %c0_2] : memref<256x8xf32, #tpu.memory_space<vmem>>, vector<256x8xf32>
    %cst = arith.constant dense<0.000000e+00> : vector<256x256xf32>
    %2 = tpu.matmul %1, %0, %cst {dimension_numbers = #tpu.dot_dimension_numbers<[1], [0], [0], [1], [0, 0, 1, 1], [], []>} : vector<256x8xf32>, vector<8x256xf32>, vector<256x256xf32> -> vector<256x256xf32>
    %c0_3 = arith.constant 0 : index
    %c0_4 = arith.constant 0 : index
    %3 = vector.load %arg3[%c0_3, %c0_4] : memref<256x1xf32, #tpu.memory_space<vmem>>, vector<256x1xf32>
    %4 = vector.broadcast %3 : vector<256x1xf32> to vector<256x256xf32>
    %5 = arith.addf %2, %4 : vector<256x256xf32>
    %cst_5 = arith.constant 0.000000e+00 : f32
    %6 = vector.broadcast %cst_5 : f32 to vector<256x256xf32>
    %7 = arith.maximumf %5, %6 : vector<256x256xf32>
    %c0_6 = arith.constant 0 : index
    %c0_7 = arith.constant 0 : index
    %8 = vector.load %arg4[%c0_6, %c0_7] : memref<256x256xf32, #tpu.memory_space<vmem>>, vector<256x256xf32>
    %cst_8 = arith.constant dense<0.000000e+00> : vector<256x256xf32>
    %9 = tpu.matmul %8, %7, %cst_8 {dimension_numbers = #tpu.dot_dimension_numbers<[1], [0], [0], [1], [0, 0, 1, 1], [], []>} : vector<256x256xf32>, vector<256x256xf32>, vector<256x256xf32> -> vector<256x256xf32>
    %c0_9 = arith.constant 0 : index
    %c0_10 = arith.constant 0 : index
    %10 = vector.load %arg5[%c0_9, %c0_10] : memref<256x1xf32, #tpu.memory_space<vmem>>, vector<256x1xf32>
    %11 = vector.broadcast %10 : vector<256x1xf32> to vector<256x256xf32>
    %12 = arith.addf %9, %11 : vector<256x256xf32>
    %cst_11 = arith.constant 0.000000e+00 : f32
    %13 = vector.broadcast %cst_11 : f32 to vector<256x256xf32>
    %14 = arith.maximumf %12, %13 : vector<256x256xf32>
    %c0_12 = arith.constant 0 : index
    %c0_13 = arith.constant 0 : index
    %15 = vector.load %arg6[%c0_12, %c0_13] : memref<8x256xf32, #tpu.memory_space<vmem>>, vector<8x256xf32>
    %cst_14 = arith.constant dense<0.000000e+00> : vector<8x256xf32>
    %16 = tpu.matmul %15, %14, %cst_14 {dimension_numbers = #tpu.dot_dimension_numbers<[1], [0], [0], [1], [0, 0, 1, 1], [], []>} : vector<8x256xf32>, vector<256x256xf32>, vector<8x256xf32> -> vector<8x256xf32>
    %17 = arith.addf %0, %16 : vector<8x256xf32>
    %c0_15 = arith.constant 0 : index
    %c0_16 = arith.constant 0 : index
    %18 = vector.load %arg7[%c0_15, %c0_16] : memref<1x1xf32, #tpu.memory_space<vmem>>, vector<1x1xf32>
    %19 = vector.broadcast %18 : vector<1x1xf32> to vector<8x256xf32>
    %20 = arith.addf %17, %19 : vector<8x256xf32>
    %c0_17 = arith.constant 0 : index
    %c0_18 = arith.constant 0 : index
    %21 = vector.load %arg8[%c0_17, %c0_18] : memref<8x256xf32, #tpu.memory_space<vmem>>, vector<8x256xf32>
    tpu.vector_store %arg8[%c0_17, %c0_18], %20 {strides = array<i32>} : memref<8x256xf32, #tpu.memory_space<vmem>>, vector<8x256xf32>,
    return
  }
  func.func @transform_0(%arg0: i32) -> (i32, i32) {
    %c0_i32 = arith.constant 0 : i32
    %c0_i32_0 = arith.constant 0 : i32
    return %c0_i32, %arg0 : i32, i32
  }
  func.func @transform_1(%arg0: i32) -> (i32, i32) {
    %c0_i32 = arith.constant 0 : i32
    %c0_i32_0 = arith.constant 0 : i32
    %c0_i32_1 = arith.constant 0 : i32
    return %c0_i32, %c0_i32_0 : i32, i32
  }
  func.func @transform_2(%arg0: i32) -> (i32, i32) {
    %c0_i32 = arith.constant 0 : i32
    %c0_i32_0 = arith.constant 0 : i32
    %c0_i32_1 = arith.constant 0 : i32
    return %c0_i32, %c0_i32_0 : i32, i32
  }
  func.func @transform_3(%arg0: i32) -> (i32, i32) {
    %c0_i32 = arith.constant 0 : i32
    %c0_i32_0 = arith.constant 0 : i32
    %c0_i32_1 = arith.constant 0 : i32
    return %c0_i32, %c0_i32_0 : i32, i32
  }
  func.func @transform_4(%arg0: i32) -> (i32, i32) {
    %c0_i32 = arith.constant 0 : i32
    %c0_i32_0 = arith.constant 0 : i32
    %c0_i32_1 = arith.constant 0 : i32
    return %c0_i32, %c0_i32_0 : i32, i32
  }
  func.func @transform_5(%arg0: i32) -> (i32, i32) {
    %c0_i32 = arith.constant 0 : i32
    %c0_i32_0 = arith.constant 0 : i32
    %c0_i32_1 = arith.constant 0 : i32
    return %c0_i32, %c0_i32_0 : i32, i32
  }
  func.func @transform_6(%arg0: i32) -> (i32, i32) {
    %c0_i32 = arith.constant 0 : i32
    %c0_i32_0 = arith.constant 0 : i32
    %c0_i32_1 = arith.constant 0 : i32
    return %c0_i32, %c0_i32_0 : i32, i32
  }
  func.func @transform_7(%arg0: i32) -> (i32, i32) {
    %c0_i32 = arith.constant 0 : i32
    %c0_i32_0 = arith.constant 0 : i32
    return %c0_i32, %arg0 : i32, i32
  }
}

</mosaic_0001>

<llo_original>
// kernel: tpu_custom_call.1
$region0: #{tpu_custom_call.1}
  #allocation0 [shape = 'u32[]', space=smem, size = 0x4, offset = 0x4, fixed_abs, tag = 'smem constant byte address 0x4 - core index']
  #allocation1 [shape = 'u32[144,128]{1,0:T(1,128)}', space=vmem, size = 0x12000, scoped, tag = 'internal scratch']
  #allocation2 [shape = 'f32[1,1]{1,0:T(1,128)S(1)}', space=vmem, size = 0x200, scoped, tag = 'scoped memory for tpu_custom_call.1']
  %s0 = inlined_call_operand.vmem [shape: f32[8,256], index: 0, kind: input, shape index: {}]
  %s1 = inlined_call_operand.vmem [shape: f32[256,8], index: 1, kind: input, shape index: {}]
  %s2 = inlined_call_operand.vmem [shape: f32[256,1], index: 2, kind: input, shape index: {}]
  %s3 = inlined_call_operand.vmem [shape: f32[256,256], index: 3, kind: input, shape index: {}]
  %s4 = inlined_call_operand.vmem [shape: f32[256,1], index: 4, kind: input, shape index: {}]
  %s5 = inlined_call_operand.vmem [shape: f32[8,256], index: 5, kind: input, shape index: {}]
  %s6 = inlined_call_operand.<no memory space> [shape: f32[1,1], index: 6, kind: input, shape index: {}]
  %s7 = inlined_call_operand.hbm [shape: f32[8,256], index: 7, kind: output, shape index: {}]
  %s8 = sld [smem:[#allocation0]]
  $region38: #{tpu_custom_call.1} parent=0
    _
  %s10 = ssub.s32 1, %s8
  %s11 = scalar_select 0, %s10, %s8
  %v12 = vstv %s6
  %13 = vst [vmem:[#allocation2] sm:$0x1] %v12
  $region1: #{tpu_custom_call.1} parent=0
    #allocation3 [shape = 'u8[8192]{0}', space=vmem, size = 0x2000, scoped, tag = 'output window, operand 0, single buffered']
    #allocation4 [shape = 's32[1]{0}', space=sflag, size = 0x4, scoped, tag = 'scoped memory for tpu_custom_call.1']
    %14 = vsyncpa [#allocation4], 0
    // Predicated region
    $region2: #{tpu_custom_call.1} parent=1 // pred_check
      _
    $region3: #{tpu_custom_call.1} parent=1 // pred_check_branch
      %16 = sbr.rel (0) target = $region5
    $region4: #{tpu_custom_call.1} parent=1 // pred_region
      _
    $region5: #{tpu_custom_call.1} parent=1 // pred_fallthru
      _
    // Predicated region
    $region6: #{tpu_custom_call.1} parent=1 // pred_check
      _
    $region7: #{tpu_custom_call.1} parent=1 // pred_check_branch
      %18 = sbr.rel (0) target = $region9
    $region8: #{tpu_custom_call.1} parent=1 // pred_region
      _
    $region9: #{tpu_custom_call.1} parent=1 // pred_fallthru
      _
    // Predicated region
    $region10: #{tpu_custom_call.1} parent=1 // pred_check
      _
    $region11: #{tpu_custom_call.1} parent=1 // pred_check_branch
      %20 = sbr.rel (0) target = $region13
    $region12: #{tpu_custom_call.1} parent=1 // pred_region
      _
    $region13: #{tpu_custom_call.1} parent=1 // pred_fallthru
      _
    // Predicated region
    $region14: #{tpu_custom_call.1} parent=1 // pred_check
      _
    $region15: #{tpu_custom_call.1} parent=1 // pred_check_branch
      %22 = sbr.rel (0) target = $region17
    $region16: #{tpu_custom_call.1} parent=1 // pred_region
      _
    $region17: #{tpu_custom_call.1} parent=1 // pred_fallthru
      _
    // Predicated region
    $region18: #{tpu_custom_call.1} parent=1 // pred_check
      _
    $region19: #{tpu_custom_call.1} parent=1 // pred_check_branch
      %24 = sbr.rel (0) target = $region21
    $region20: #{tpu_custom_call.1} parent=1 // pred_region
      _
    $region21: #{tpu_custom_call.1} parent=1 // pred_fallthru
      _
    // Predicated region
    $region22: #{tpu_custom_call.1} parent=1 // pred_check
      _
    $region23: #{tpu_custom_call.1} parent=1 // pred_check_branch
      %26 = sbr.rel (0) target = $region25
    $region24: #{tpu_custom_call.1} parent=1 // pred_region
      _
    $region25: #{tpu_custom_call.1} parent=1 // pred_fallthru
      _
    // Predicated region
    $region26: #{tpu_custom_call.1} parent=1 // pred_check
      _
    $region27: #{tpu_custom_call.1} parent=1 // pred_check_branch
      %28 = sbr.rel (0) target = $region29
    $region28: #{tpu_custom_call.1} parent=1 // pred_region
      _
    $region29: #{tpu_custom_call.1} parent=1 // pred_fallthru
      _
    %v29 = vld [vmem:[%s0] sm:$0xff]
    %v30 = vld [vmem:[%s0 + $0x8] sm:$0xff]
    %v31 = vld [vmem:[%s1] sm:$0xff]
    %v32 = vld [vmem:[%s1 + $0x8] sm:$0xff]
    %v33 = vld [vmem:[%s1 + $0x10] sm:$0xff]
    %v34 = vld [vmem:[%s1 + $0x18] sm:$0xff]
    %v35 = vld [vmem:[%s1 + $0x20] sm:$0xff]
    %v36 = vld [vmem:[%s1 + $0x28] sm:$0xff]
    %v37 = vld [vmem:[%s1 + $0x30] sm:$0xff]
    %v38 = vld [vmem:[%s1 + $0x38] sm:$0xff]
    %v39 = vld [vmem:[%s1 + $0x40] sm:$0xff]
    %v40 = vld [vmem:[%s1 + $0x48] sm:$0xff]
    %v41 = vld [vmem:[%s1 + $0x50] sm:$0xff]
    %v42 = vld [vmem:[%s1 + $0x58] sm:$0xff]
    %v43 = vld [vmem:[%s1 + $0x60] sm:$0xff]
    %v44 = vld [vmem:[%s1 + $0x68] sm:$0xff]
    %v45 = vld [vmem:[%s1 + $0x70] sm:$0xff]
    %v46 = vld [vmem:[%s1 + $0x78] sm:$0xff]
    %v47 = vld [vmem:[%s1 + $0x80] sm:$0xff]
    %v48 = vld [vmem:[%s1 + $0x88] sm:$0xff]
    %v49 = vld [vmem:[%s1 + $0x90] sm:$0xff]
    %v50 = vld [vmem:[%s1 + $0x98] sm:$0xff]
    %v51 = vld [vmem:[%s1 + $0xa0] sm:$0xff]
    %v52 = vld [vmem:[%s1 + $0xa8] sm:$0xff]
    %v53 = vld [vmem:[%s1 + $0xb0] sm:$0xff]
    %v54 = vld [vmem:[%s1 + $0xb8] sm:$0xff]
    %v55 = vld [vmem:[%s1 + $0xc0] sm:$0xff]
    %v56 = vld [vmem:[%s1 + $0xc8] sm:$0xff]
    %v57 = vld [vmem:[%s1 + $0xd0] sm:$0xff]
    %v58 = vld [vmem:[%s1 + $0xd8] sm:$0xff]
    %v59 = vld [vmem:[%s1 + $0xe0] sm:$0xff]
    %v60 = vld [vmem:[%s1 + $0xe8] sm:$0xff]
    %v61 = vld [vmem:[%s1 + $0xf0] sm:$0xff]
    %v62 = vld [vmem:[%s1 + $0xf8] sm:$0xff]
    %v63 = vld [vmem:[%s2] sm:$0xff]
    %v64 = vld [vmem:[%s2 + $0x8] sm:$0xff]
    %v65 = vld [vmem:[%s2 + $0x10] sm:$0xff]
    %v66 = vld [vmem:[%s2 + $0x18] sm:$0xff]
    %v67 = vld [vmem:[%s2 + $0x20] sm:$0xff]
    %v68 = vld [vmem:[%s2 + $0x28] sm:$0xff]
    %v69 = vld [vmem:[%s2 + $0x30] sm:$0xff]
    %v70 = vld [vmem:[%s2 + $0x38] sm:$0xff]
    %v71 = vld [vmem:[%s2 + $0x40] sm:$0xff]
    %v72 = vld [vmem:[%s2 + $0x48] sm:$0xff]
    %v73 = vld [vmem:[%s2 + $0x50] sm:$0xff]
    %v74 = vld [vmem:[%s2 + $0x58] sm:$0xff]
    %v75 = vld [vmem:[%s2 + $0x60] sm:$0xff]
    %v76 = vld [vmem:[%s2 + $0x68] sm:$0xff]
    %v77 = vld [vmem:[%s2 + $0x70] sm:$0xff]
    %v78 = vld [vmem:[%s2 + $0x78] sm:$0xff]
    %v79 = vld [vmem:[%s2 + $0x80] sm:$0xff]
    %v80 = vld [vmem:[%s2 + $0x88] sm:$0xff]
    %v81 = vld [vmem:[%s2 + $0x90] sm:$0xff]
    %v82 = vld [vmem:[%s2 + $0x98] sm:$0xff]
    %v83 = vld [vmem:[%s2 + $0xa0] sm:$0xff]
    %v84 = vld [vmem:[%s2 + $0xa8] sm:$0xff]
    %v85 = vld [vmem:[%s2 + $0xb0] sm:$0xff]
    %v86 = vld [vmem:[%s2 + $0xb8] sm:$0xff]
    %v87 = vld [vmem:[%s2 + $0xc0] sm:$0xff]
    %v88 = vld [vmem:[%s2 + $0xc8] sm:$0xff]
    %v89 = vld [vmem:[%s2 + $0xd0] sm:$0xff]
    %v90 = vld [vmem:[%s2 + $0xd8] sm:$0xff]
    %v91 = vld [vmem:[%s2 + $0xe0] sm:$0xff]
    %v92 = vld [vmem:[%s2 + $0xe8] sm:$0xff]
    %v93 = vld [vmem:[%s2 + $0xf0] sm:$0xff]
    %v94 = vld [vmem:[%s2 + $0xf8] sm:$0xff]
    %96 = vset.pattern.permute.xlu0 0
    %97 = vperm.xlu0 %96, %v63
    %v98 = vpop.permute.xlu0 %97
    %101 = vset.pattern.permute.xlu0 0
    %102 = vperm.xlu0 %101, %v64
    %v103 = vpop.permute.xlu0 %102
    %106 = vset.pattern.permute.xlu0 0
    %107 = vperm.xlu0 %106, %v65
    %v108 = vpop.permute.xlu0 %107
    %111 = vset.pattern.permute.xlu0 0
    %112 = vperm.xlu0 %111, %v66
    %v113 = vpop.permute.xlu0 %112
    %116 = vset.pattern.permute.xlu0 0
    %117 = vperm.xlu0 %116, %v67
    %v118 = vpop.permute.xlu0 %117
    %121 = vset.pattern.permute.xlu0 0
    %122 = vperm.xlu0 %121, %v68
    %v123 = vpop.permute.xlu0 %122
    %126 = vset.pattern.permute.xlu0 0
    %127 = vperm.xlu0 %126, %v69
    %v128 = vpop.permute.xlu0 %127
    %131 = vset.pattern.permute.xlu0 0
    %132 = vperm.xlu0 %131, %v70
    %v133 = vpop.permute.xlu0 %132
    %136 = vset.pattern.permute.xlu0 0
    %137 = vperm.xlu0 %136, %v71
    %v138 = vpop.permute.xlu0 %137
    %141 = vset.pattern.permute.xlu0 0
    %142 = vperm.xlu0 %141, %v72
    %v143 = vpop.permute.xlu0 %142
    %146 = vset.pattern.permute.xlu0 0
    %147 = vperm.xlu0 %146, %v73
    %v148 = vpop.permute.xlu0 %147
    %151 = vset.pattern.permute.xlu0 0
    %152 = vperm.xlu0 %151, %v74
    %v153 = vpop.permute.xlu0 %152
    %156 = vset.pattern.permute.xlu0 0
    %157 = vperm.xlu0 %156, %v75
    %v158 = vpop.permute.xlu0 %157
    %161 = vset.pattern.permute.xlu0 0
    %162 = vperm.xlu0 %161, %v76
    %v163 = vpop.permute.xlu0 %162
    %166 = vset.pattern.permute.xlu0 0
    %167 = vperm.xlu0 %166, %v77
    %v168 = vpop.permute.xlu0 %167
    %171 = vset.pattern.permute.xlu0 0
    %172 = vperm.xlu0 %171, %v78
    %v173 = vpop.permute.xlu0 %172
    %176 = vset.pattern.permute.xlu0 0
    %177 = vperm.xlu0 %176, %v79
    %v178 = vpop.permute.xlu0 %177
    %181 = vset.pattern.permute.xlu0 0
    %182 = vperm.xlu0 %181, %v80
    %v183 = vpop.permute.xlu0 %182
    %186 = vset.pattern.permute.xlu0 0
    %187 = vperm.xlu0 %186, %v81
    %v188 = vpop.permute.xlu0 %187
    %191 = vset.pattern.permute.xlu0 0
    %192 = vperm.xlu0 %191, %v82
    %v193 = vpop.permute.xlu0 %192
    %196 = vset.pattern.permute.xlu0 0
    %197 = vperm.xlu0 %196, %v83
    %v198 = vpop.permute.xlu0 %197
    %201 = vset.pattern.permute.xlu0 0
    %202 = vperm.xlu0 %201, %v84
    %v203 = vpop.permute.xlu0 %202
    %206 = vset.pattern.permute.xlu0 0
    %207 = vperm.xlu0 %206, %v85
    %v208 = vpop.permute.xlu0 %207
    %211 = vset.pattern.permute.xlu0 0
    %212 = vperm.xlu0 %211, %v86
    %v213 = vpop.permute.xlu0 %212
    %216 = vset.pattern.permute.xlu0 0
    %217 = vperm.xlu0 %216, %v87
    %v218 = vpop.permute.xlu0 %217
    %221 = vset.pattern.permute.xlu0 0
    %222 = vperm.xlu0 %221, %v88
    %v223 = vpop.permute.xlu0 %222
    %226 = vset.pattern.permute.xlu0 0
    %227 = vperm.xlu0 %226, %v89
    %v228 = vpop.permute.xlu0 %227
    %231 = vset.pattern.permute.xlu0 0
    %232 = vperm.xlu0 %231, %v90
    %v233 = vpop.permute.xlu0 %232
    %236 = vset.pattern.permute.xlu0 0
    %237 = vperm.xlu0 %236, %v91
    %v238 = vpop.permute.xlu0 %237
    %241 = vset.pattern.permute.xlu0 0
    %242 = vperm.xlu0 %241, %v92
    %v243 = vpop.permute.xlu0 %242
    %246 = vset.pattern.permute.xlu0 0
    %247 = vperm.xlu0 %246, %v93
    %v248 = vpop.permute.xlu0 %247
    %251 = vset.pattern.permute.xlu0 0
    %252 = vperm.xlu0 %251, %v94
    %v253 = vpop.permute.xlu0 %252
    %vm255 = vcmask 64512
    %v257 = vsel %vm255, %v31, 0
    %v260 = vsel %vm255, %v32, 0
    %v263 = vsel %vm255, %v33, 0
    %v266 = vsel %vm255, %v34, 0
    %v269 = vsel %vm255, %v35, 0
    %v272 = vsel %vm255, %v36, 0
    %v275 = vsel %vm255, %v37, 0
    %v278 = vsel %vm255, %v38, 0
    %v281 = vsel %vm255, %v39, 0
    %v284 = vsel %vm255, %v40, 0
    %v287 = vsel %vm255, %v41, 0
    %v290 = vsel %vm255, %v42, 0
    %v293 = vsel %vm255, %v43, 0
    %v296 = vsel %vm255, %v44, 0
    %v299 = vsel %vm255, %v45, 0
    %v302 = vsel %vm255, %v46, 0
    %v305 = vsel %vm255, %v47, 0
    %v308 = vsel %vm255, %v48, 0
    %v311 = vsel %vm255, %v49, 0
    %v314 = vsel %vm255, %v50, 0
    %v317 = vsel %vm255, %v51, 0
    %v320 = vsel %vm255, %v52, 0
    %v323 = vsel %vm255, %v53, 0
    %v326 = vsel %vm255, %v54, 0
    %v329 = vsel %vm255, %v55, 0
    %v332 = vsel %vm255, %v56, 0
    %v335 = vsel %vm255, %v57, 0
    %v338 = vsel %vm255, %v58, 0
    %v341 = vsel %vm255, %v59, 0
    %v344 = vsel %vm255, %v60, 0
    %v347 = vsel %vm255, %v61, 0
    %v350 = vsel %vm255, %v62, 0
    %352 = vmatprep.subr.mxu0 0.0
    %353 = vmatpush1.msra.mxu0 0.0
    %354 = vmatprep.subr.mxu0 0.0
    %355 = vmatpush1.msra.mxu0 0.0
    %356 = vmatprep.subr.mxu0 0.0
    %357 = vmatpush1.msra.mxu0 0.0
    %358 = vmatprep.subr.mxu0 0.0
    %359 = vmatpush1.msra.mxu0 0.0
    %360 = vmatprep.subr.mxu0 0.0
    %361 = vmatpush1.msra.mxu0 0.0
    %362 = vmatprep.subr.mxu0 0.0
    %363 = vmatpush1.msra.mxu0 0.0
    %364 = vmatprep.subr.mxu0 0.0
    %365 = vmatpush1.msra.mxu0 0.0
    %366 = vmatprep.subr.mxu0 0.0
    %367 = vmatpush1.msra.mxu0 0.0
    %368 = vmatprep.subr.mxu0 0.0
    %369 = vmatpush1.msra.mxu0 0.0
    %370 = vmatprep.subr.mxu0 0.0
    %371 = vmatpush1.msra.mxu0 0.0
    %372 = vmatprep.subr.mxu0 0.0
    %373 = vmatpush1.msra.mxu0 0.0
    %374 = vmatprep.subr.mxu0 0.0
    %375 = vmatpush1.msra.mxu0 0.0
    %376 = vmatprep.subr.mxu0 0.0
    %377 = vmatpush1.msra.mxu0 0.0
    %378 = vmatprep.subr.mxu0 0.0
    %379 = vmatpush1.msra.mxu0 0.0
    %380 = vmatprep.subr.mxu0 0.0
    %381 = vmatpush1.msra.mxu0 0.0
    %382 = vmatprep.subr.mxu0 %v30
    %383 = vmatpush1.msra.mxu0 %v29
    %384 = vmatprep.subr.mxu0 0.0
    %385 = vmatpush2.msra.mxu0 0.0
    %386 = vmatprep.subr.mxu0 0.0
    %387 = vmatpush2.msra.mxu0 0.0
    %388 = vmatprep.subr.mxu0 0.0
    %389 = vmatpush2.msra.mxu0 0.0
    %390 = vmatprep.subr.mxu0 0.0
    %391 = vmatpush2.msra.mxu0 0.0
    %392 = vmatprep.subr.mxu0 0.0
    %393 = vmatpush2.msra.mxu0 0.0
    %394 = vmatprep.subr.mxu0 0.0
    %395 = vmatpush2.msra.mxu0 0.0
    %396 = vmatprep.subr.mxu0 0.0
    %397 = vmatpush2.msra.mxu0 0.0
    %398 = vmatprep.subr.mxu0 0.0
    %399 = vmatpush2.msra.mxu0 0.0
    %400 = vmatprep.subr.mxu0 0.0
    %401 = vmatpush2.msra.mxu0 0.0
    %402 = vmatprep.subr.mxu0 0.0
    %403 = vmatpush2.msra.mxu0 0.0
    %404 = vmatprep.subr.mxu0 0.0
    %405 = vmatpush2.msra.mxu0 0.0
    %406 = vmatprep.subr.mxu0 0.0
    %407 = vmatpush2.msra.mxu0 0.0
    %408 = vmatprep.subr.mxu0 0.0
    %409 = vmatpush2.msra.mxu0 0.0
    %410 = vmatprep.subr.mxu0 0.0
    %411 = vmatpush2.msra.mxu0 0.0
    %412 = vmatprep.subr.mxu0 0.0
    %413 = vmatpush2.msra.mxu0 0.0
    %414 = vmatprep.subr.mxu0 0.0
    %415 = vmatpush2.msra.mxu0 0.0
    %416 = vmatprep.mubr.f32.mxu0 0.0
    %417 = vmatmul.mubr.f32.gmra.mxu0 %v257
    %v418 = vpop.f32.mrf.mxu0
    %v419 = vadd.f32 %v98, %v418
    %v420 = vpop.f32.mrf.mxu0
    %v421 = vadd.f32 %v98, %v420
    %422 = vmatprep.mubr.f32.mxu0 0.0
    %423 = vmatmul.mubr.f32.gmra.mxu0 %v260
    %v424 = vpop.f32.mrf.mxu0
    %v425 = vadd.f32 %v103, %v424
    %v426 = vpop.f32.mrf.mxu0
    %v427 = vadd.f32 %v103, %v426
    %428 = vmatprep.mubr.f32.mxu0 0.0
    %429 = vmatmul.mubr.f32.gmra.mxu0 %v263
    %v430 = vpop.f32.mrf.mxu0
    %v431 = vadd.f32 %v108, %v430
    %v432 = vpop.f32.mrf.mxu0
    %v433 = vadd.f32 %v108, %v432
    %434 = vmatprep.mubr.f32.mxu0 0.0
    %435 = vmatmul.mubr.f32.gmra.mxu0 %v266
    %v436 = vpop.f32.mrf.mxu0
    %v437 = vadd.f32 %v113, %v436
    %v438 = vpop.f32.mrf.mxu0
    %v439 = vadd.f32 %v113, %v438
    %440 = vmatprep.mubr.f32.mxu0 0.0
    %441 = vmatmul.mubr.f32.gmra.mxu0 %v269
    %v442 = vpop.f32.mrf.mxu0
    %v443 = vadd.f32 %v118, %v442
    %v444 = vpop.f32.mrf.mxu0
    %v445 = vadd.f32 %v118, %v444
    %446 = vmatprep.mubr.f32.mxu0 0.0
    %447 = vmatmul.mubr.f32.gmra.mxu0 %v272
    %v448 = vpop.f32.mrf.mxu0
    %v449 = vadd.f32 %v123, %v448
    %v450 = vpop.f32.mrf.mxu0
    %v451 = vadd.f32 %v123, %v450
    %452 = vmatprep.mubr.f32.mxu0 0.0
    %453 = vmatmul.mubr.f32.gmra.mxu0 %v275
    %v454 = vpop.f32.mrf.mxu0
    %v455 = vadd.f32 %v128, %v454
    %v456 = vpop.f32.mrf.mxu0
    %v457 = vadd.f32 %v128, %v456
    %458 = vmatprep.mubr.f32.mxu0 0.0
    %459 = vmatmul.mubr.f32.gmra.mxu0 %v278
    %v460 = vpop.f32.mrf.mxu0
    %v461 = vadd.f32 %v133, %v460
    %v462 = vpop.f32.mrf.mxu0
    %v463 = vadd.f32 %v133, %v462
    %464 = vmatprep.mubr.f32.mxu0 0.0
    %465 = vmatmul.mubr.f32.gmra.mxu0 %v281
    %v466 = vpop.f32.mrf.mxu0
    %v467 = vadd.f32 %v138, %v466
    %v468 = vpop.f32.mrf.mxu0
    %v469 = vadd.f32 %v138, %v468
    %470 = vmatprep.mubr.f32.mxu0 0.0
    %471 = vmatmul.mubr.f32.gmra.mxu0 %v284
    %v472 = vpop.f32.mrf.mxu0
    %v473 = vadd.f32 %v143, %v472
    %v474 = vpop.f32.mrf.mxu0
    %v475 = vadd.f32 %v143, %v474
    %476 = vmatprep.mubr.f32.mxu0 0.0
    %477 = vmatmul.mubr.f32.gmra.mxu0 %v287
    %v478 = vpop.f32.mrf.mxu0
    %v479 = vadd.f32 %v148, %v478
    %v480 = vpop.f32.mrf.mxu0
    %v481 = vadd.f32 %v148, %v480
    %482 = vmatprep.mubr.f32.mxu0 0.0
    %483 = vmatmul.mubr.f32.gmra.mxu0 %v290
    %v484 = vpop.f32.mrf.mxu0
    %v485 = vadd.f32 %v153, %v484
    %v486 = vpop.f32.mrf.mxu0
    %v487 = vadd.f32 %v153, %v486
    %488 = vmatprep.mubr.f32.mxu0 0.0
    %489 = vmatmul.mubr.f32.gmra.mxu0 %v293
    %v490 = vpop.f32.mrf.mxu0
    %v491 = vadd.f32 %v158, %v490
    %v492 = vpop.f32.mrf.mxu0
    %v493 = vadd.f32 %v158, %v492
    %494 = vmatprep.mubr.f32.mxu0 0.0
    %495 = vmatmul.mubr.f32.gmra.mxu0 %v296
    %v496 = vpop.f32.mrf.mxu0
    %v497 = vadd.f32 %v163, %v496
    %v498 = vpop.f32.mrf.mxu0
    %v499 = vadd.f32 %v163, %v498
    %500 = vmatprep.mubr.f32.mxu0 0.0
    %501 = vmatmul.mubr.f32.gmra.mxu0 %v299
    %v502 = vpop.f32.mrf.mxu0
    %v503 = vadd.f32 %v168, %v502
    %v504 = vpop.f32.mrf.mxu0
    %v505 = vadd.f32 %v168, %v504
    %506 = vmatprep.mubr.f32.mxu0 0.0
    %507 = vmatmul.mubr.f32.gmra.mxu0 %v302
    %v508 = vpop.f32.mrf.mxu0
    %v509 = vadd.f32 %v173, %v508
    %v510 = vpop.f32.mrf.mxu0
    %v511 = vadd.f32 %v173, %v510
    %512 = vmatprep.mubr.f32.mxu0 0.0
    %513 = vmatmul.mubr.f32.gmra.mxu0 %v305
    %v514 = vpop.f32.mrf.mxu0
    %v515 = vadd.f32 %v178, %v514
    %v516 = vpop.f32.mrf.mxu0
    %v517 = vadd.f32 %v178, %v516
    %518 = vmatprep.mubr.f32.mxu0 0.0
    %519 = vmatmul.mubr.f32.gmra.mxu0 %v308
    %v520 = vpop.f32.mrf.mxu0
    %v521 = vadd.f32 %v183, %v520
    %v522 = vpop.f32.mrf.mxu0
    %v523 = vadd.f32 %v183, %v522
    %524 = vmatprep.mubr.f32.mxu0 0.0
    %525 = vmatmul.mubr.f32.gmra.mxu0 %v311
    %v526 = vpop.f32.mrf.mxu0
    %v527 = vadd.f32 %v188, %v526
    %v528 = vpop.f32.mrf.mxu0
    %v529 = vadd.f32 %v188, %v528
    %530 = vmatprep.mubr.f32.mxu0 0.0
    %531 = vmatmul.mubr.f32.gmra.mxu0 %v314
    %v532 = vpop.f32.mrf.mxu0
    %v533 = vadd.f32 %v193, %v532
    %v534 = vpop.f32.mrf.mxu0
    %v535 = vadd.f32 %v193, %v534
    %536 = vmatprep.mubr.f32.mxu0 0.0
    %537 = vmatmul.mubr.f32.gmra.mxu0 %v317
    %v538 = vpop.f32.mrf.mxu0
    %v539 = vadd.f32 %v198, %v538
    %v540 = vpop.f32.mrf.mxu0
    %v541 = vadd.f32 %v198, %v540
    %542 = vmatprep.mubr.f32.mxu0 0.0
    %543 = vmatmul.mubr.f32.gmra.mxu0 %v320
    %v544 = vpop.f32.mrf.mxu0
    %v545 = vadd.f32 %v203, %v544
    %v546 = vpop.f32.mrf.mxu0
    %v547 = vadd.f32 %v203, %v546
    %548 = vmatprep.mubr.f32.mxu0 0.0
    %549 = vmatmul.mubr.f32.gmra.mxu0 %v323
    %v550 = vpop.f32.mrf.mxu0
    %v551 = vadd.f32 %v208, %v550
    %v552 = vpop.f32.mrf.mxu0
    %v553 = vadd.f32 %v208, %v552
    %554 = vmatprep.mubr.f32.mxu0 0.0
    %555 = vmatmul.mubr.f32.gmra.mxu0 %v326
    %v556 = vpop.f32.mrf.mxu0
    %v557 = vadd.f32 %v213, %v556
    %v558 = vpop.f32.mrf.mxu0
    %v559 = vadd.f32 %v213, %v558
    %560 = vmatprep.mubr.f32.mxu0 0.0
    %561 = vmatmul.mubr.f32.gmra.mxu0 %v329
    %v562 = vpop.f32.mrf.mxu0
    %v563 = vadd.f32 %v218, %v562
    %v564 = vpop.f32.mrf.mxu0
    %v565 = vadd.f32 %v218, %v564
    %566 = vmatprep.mubr.f32.mxu0 0.0
    %567 = vmatmul.mubr.f32.gmra.mxu0 %v332
    %v568 = vpop.f32.mrf.mxu0
    %v569 = vadd.f32 %v223, %v568
    %v570 = vpop.f32.mrf.mxu0
    %v571 = vadd.f32 %v223, %v570
    %572 = vmatprep.mubr.f32.mxu0 0.0
    %573 = vmatmul.mubr.f32.gmra.mxu0 %v335
    %v574 = vpop.f32.mrf.mxu0
    %v575 = vadd.f32 %v228, %v574
    %v576 = vpop.f32.mrf.mxu0
    %v577 = vadd.f32 %v228, %v576
    %578 = vmatprep.mubr.f32.mxu0 0.0
    %579 = vmatmul.mubr.f32.gmra.mxu0 %v338
    %v580 = vpop.f32.mrf.mxu0
    %v581 = vadd.f32 %v233, %v580
    %v582 = vpop.f32.mrf.mxu0
    %v583 = vadd.f32 %v233, %v582
    %584 = vmatprep.mubr.f32.mxu0 0.0
    %585 = vmatmul.mubr.f32.gmra.mxu0 %v341
    %v586 = vpop.f32.mrf.mxu0
    %v587 = vadd.f32 %v238, %v586
    %v588 = vpop.f32.mrf.mxu0
    %v589 = vadd.f32 %v238, %v588
    %590 = vmatprep.mubr.f32.mxu0 0.0
    %591 = vmatmul.mubr.f32.gmra.mxu0 %v344
    %v592 = vpop.f32.mrf.mxu0
    %v593 = vadd.f32 %v243, %v592
    %v594 = vpop.f32.mrf.mxu0
    %v595 = vadd.f32 %v243, %v594
    %596 = vmatprep.mubr.f32.mxu0 0.0
    %597 = vmatmul.mubr.f32.gmra.mxu0 %v347
    %v598 = vpop.f32.mrf.mxu0
    %v599 = vadd.f32 %v248, %v598
    %v600 = vpop.f32.mrf.mxu0
    %v601 = vadd.f32 %v248, %v600
    %602 = vmatprep.mubr.f32.mxu0 0.0
    %603 = vmatmul.mubr.f32.gmra.mxu0 %v350
    %v604 = vpop.f32.mrf.mxu0
    %v605 = vadd.f32 %v253, %v604
    %v606 = vpop.f32.mrf.mxu0
    %v607 = vadd.f32 %v253, %v606
    %608 = vdwg.mxu0
    %v609 = vmax.f32 %v419, 0.0
    %v610 = vmax.f32 %v421, 0.0
    %v611 = vmax.f32 %v425, 0.0
    %v612 = vmax.f32 %v427, 0.0
    %v613 = vmax.f32 %v431, 0.0
    %v614 = vmax.f32 %v433, 0.0
    %v615 = vmax.f32 %v437, 0.0
    %v616 = vmax.f32 %v439, 0.0
    %v617 = vmax.f32 %v443, 0.0
    %v618 = vmax.f32 %v445, 0.0
    %v619 = vmax.f32 %v449, 0.0
    %v620 = vmax.f32 %v451, 0.0
    %v621 = vmax.f32 %v455, 0.0
    %v622 = vmax.f32 %v457, 0.0
    %v623 = vmax.f32 %v461, 0.0
    %v624 = vmax.f32 %v463, 0.0
    %v625 = vmax.f32 %v467, 0.0
    %v626 = vmax.f32 %v469, 0.0
    %v627 = vmax.f32 %v473, 0.0
    %v628 = vmax.f32 %v475, 0.0
    %v629 = vmax.f32 %v479, 0.0
    %v630 = vmax.f32 %v481, 0.0
    %v631 = vmax.f32 %v485, 0.0
    %v632 = vmax.f32 %v487, 0.0
    %v633 = vmax.f32 %v491, 0.0
    %v634 = vmax.f32 %v493, 0.0
    %v635 = vmax.f32 %v497, 0.0
    %v636 = vmax.f32 %v499, 0.0
    %v637 = vmax.f32 %v503, 0.0
    %v638 = vmax.f32 %v505, 0.0
    %v639 = vmax.f32 %v509, 0.0
    %v640 = vmax.f32 %v511, 0.0
    %v641 = vmax.f32 %v515, 0.0
    %v642 = vmax.f32 %v517, 0.0
    %v643 = vmax.f32 %v521, 0.0
    %v644 = vmax.f32 %v523, 0.0
    %v645 = vmax.f32 %v527, 0.0
    %v646 = vmax.f32 %v529, 0.0
    %v647 = vmax.f32 %v533, 0.0
    %v648 = vmax.f32 %v535, 0.0
    %v649 = vmax.f32 %v539, 0.0
    %v650 = vmax.f32 %v541, 0.0
    %v651 = vmax.f32 %v545, 0.0
    %v652 = vmax.f32 %v547, 0.0
    %v653 = vmax.f32 %v551, 0.0
    %v654 = vmax.f32 %v553, 0.0
    %v655 = vmax.f32 %v557, 0.0
    %v656 = vmax.f32 %v559, 0.0
    %v657 = vmax.f32 %v563, 0.0
    %v658 = vmax.f32 %v565, 0.0
    %v659 = vmax.f32 %v569, 0.0
    %v660 = vmax.f32 %v571, 0.0
    %v661 = vmax.f32 %v575, 0.0
    %v662 = vmax.f32 %v577, 0.0
    %v663 = vmax.f32 %v581, 0.0
    %v664 = vmax.f32 %v583, 0.0
    %v665 = vmax.f32 %v587, 0.0
    %v666 = vmax.f32 %v589, 0.0
    %v667 = vmax.f32 %v593, 0.0
    %v668 = vmax.f32 %v595, 0.0
    %v669 = vmax.f32 %v599, 0.0
    %v670 = vmax.f32 %v601, 0.0
    %v671 = vmax.f32 %v605, 0.0
    %v672 = vmax.f32 %v607, 0.0
    %v673 = vld [vmem:[%s3] sm:$0xff]
    %v674 = vld [vmem:[%s3 + $0x8] sm:$0xff]
    %v675 = vld [vmem:[%s3 + $0x10] sm:$0xff]
    %v676 = vld [vmem:[%s3 + $0x18] sm:$0xff]
    %v677 = vld [vmem:[%s3 + $0x20] sm:$0xff]
    %v678 = vld [vmem:[%s3 + $0x28] sm:$0xff]
    %v679 = vld [vmem:[%s3 + $0x30] sm:$0xff]
    %v680 = vld [vmem:[%s3 + $0x38] sm:$0xff]
    %v681 = vld [vmem:[%s3 + $0x40] sm:$0xff]
    %v682 = vld [vmem:[%s3 + $0x48] sm:$0xff]
    %v683 = vld [vmem:[%s3 + $0x50] sm:$0xff]
    %v684 = vld [vmem:[%s3 + $0x58] sm:$0xff]
    %v685 = vld [vmem:[%s3 + $0x60] sm:$0xff]
    %v686 = vld [vmem:[%s3 + $0x68] sm:$0xff]
    %v687 = vld [vmem:[%s3 + $0x70] sm:$0xff]
    %v688 = vld [vmem:[%s3 + $0x78] sm:$0xff]
    %v689 = vld [vmem:[%s3 + $0x80] sm:$0xff]
    %v690 = vld [vmem:[%s3 + $0x88] sm:$0xff]
    %v691 = vld [vmem:[%s3 + $0x90] sm:$0xff]
    %v692 = vld [vmem:[%s3 + $0x98] sm:$0xff]
    %v693 = vld [vmem:[%s3 + $0xa0] sm:$0xff]
    %v694 = vld [vmem:[%s3 + $0xa8] sm:$0xff]
    %v695 = vld [vmem:[%s3 + $0xb0] sm:$0xff]
    %v696 = vld [vmem:[%s3 + $0xb8] sm:$0xff]
    %v697 = vld [vmem:[%s3 + $0xc0] sm:$0xff]
    %v698 = vld [vmem:[%s3 + $0xc8] sm:$0xff]
    %v699 = vld [vmem:[%s3 + $0xd0] sm:$0xff]
    %v700 = vld [vmem:[%s3 + $0xd8] sm:$0xff]
    %v701 = vld [vmem:[%s3 + $0xe0] sm:$0xff]
    %v702 = vld [vmem:[%s3 + $0xe8] sm:$0xff]
    %v703 = vld [vmem:[%s3 + $0xf0] sm:$0xff]
    %v704 = vld [vmem:[%s3 + $0xf8] sm:$0xff]
    %v705 = vld [vmem:[%s3 + $0x100] sm:$0xff]
    %v706 = vld [vmem:[%s3 + $0x108] sm:$0xff]
    %v707 = vld [vmem:[%s3 + $0x110] sm:$0xff]
    %v708 = vld [vmem:[%s3 + $0x118] sm:$0xff]
    %v709 = vld [vmem:[%s3 + $0x120] sm:$0xff]
    %v710 = vld [vmem:[%s3 + $0x128] sm:$0xff]
    %v711 = vld [vmem:[%s3 + $0x130] sm:$0xff]
    %v712 = vld [vmem:[%s3 + $0x138] sm:$0xff]
    %v713 = vld [vmem:[%s3 + $0x140] sm:$0xff]
    %v714 = vld [vmem:[%s3 + $0x148] sm:$0xff]
    %v715 = vld [vmem:[%s3 + $0x150] sm:$0xff]
    %v716 = vld [vmem:[%s3 + $0x158] sm:$0xff]
    %v717 = vld [vmem:[%s3 + $0x160] sm:$0xff]
    %v718 = vld [vmem:[%s3 + $0x168] sm:$0xff]
    %v719 = vld [vmem:[%s3 + $0x170] sm:$0xff]
    %v720 = vld [vmem:[%s3 + $0x178] sm:$0xff]
    %v721 = vld [vmem:[%s3 + $0x180] sm:$0xff]
    %v722 = vld [vmem:[%s3 + $0x188] sm:$0xff]
    %v723 = vld [vmem:[%s3 + $0x190] sm:$0xff]
    %v724 = vld [vmem:[%s3 + $0x198] sm:$0xff]
    %v725 = vld [vmem:[%s3 + $0x1a0] sm:$0xff]
    %v726 = vld [vmem:[%s3 + $0x1a8] sm:$0xff]
    %v727 = vld [vmem:[%s3 + $0x1b0] sm:$0xff]
    %v728 = vld [vmem:[%s3 + $0x1b8] sm:$0xff]
    %v729 = vld [vmem:[%s3 + $0x1c0] sm:$0xff]
    %v730 = vld [vmem:[%s3 + $0x1c8] sm:$0xff]
    %v731 = vld [vmem:[%s3 + $0x1d0] sm:$0xff]
    %v732 = vld [vmem:[%s3 + $0x1d8] sm:$0xff]
    %v733 = vld [vmem:[%s3 + $0x1e0] sm:$0xff]
    %v734 = vld [vmem:[%s3 + $0x1e8] sm:$0xff]
    %v735 = vld [vmem:[%s3 + $0x1f0] sm:$0xff]
    %v736 = vld [vmem:[%s3 + $0x1f8] sm:$0xff]
    %v737 = vld [vmem:[%s4] sm:$0xff]
    %v738 = vld [vmem:[%s4 + $0x8] sm:$0xff]
    %v739 = vld [vmem:[%s4 + $0x10] sm:$0xff]
    %v740 = vld [vmem:[%s4 + $0x18] sm:$0xff]
    %v741 = vld [vmem:[%s4 + $0x20] sm:$0xff]
    %v742 = vld [vmem:[%s4 + $0x28] sm:$0xff]
    %v743 = vld [vmem:[%s4 + $0x30] sm:$0xff]
    %v744 = vld [vmem:[%s4 + $0x38] sm:$0xff]
    %v745 = vld [vmem:[%s4 + $0x40] sm:$0xff]
    %v746 = vld [vmem:[%s4 + $0x48] sm:$0xff]
    %v747 = vld [vmem:[%s4 + $0x50] sm:$0xff]
    %v748 = vld [vmem:[%s4 + $0x58] sm:$0xff]
    %v749 = vld [vmem:[%s4 + $0x60] sm:$0xff]
    %v750 = vld [vmem:[%s4 + $0x68] sm:$0xff]
    %v751 = vld [vmem:[%s4 + $0x70] sm:$0xff]
    %v752 = vld [vmem:[%s4 + $0x78] sm:$0xff]
    %v753 = vld [vmem:[%s4 + $0x80] sm:$0xff]
    %v754 = vld [vmem:[%s4 + $0x88] sm:$0xff]
    %v755 = vld [vmem:[%s4 + $0x90] sm:$0xff]
    %v756 = vld [vmem:[%s4 + $0x98] sm:$0xff]
    %v757 = vld [vmem:[%s4 + $0xa0] sm:$0xff]
    %v758 = vld [vmem:[%s4 + $0xa8] sm:$0xff]
    %v759 = vld [vmem:[%s4 + $0xb0] sm:$0xff]
    %v760 = vld [vmem:[%s4 + $0xb8] sm:$0xff]
    %v761 = vld [vmem:[%s4 + $0xc0] sm:$0xff]
    %v762 = vld [vmem:[%s4 + $0xc8] sm:$0xff]
    %v763 = vld [vmem:[%s4 + $0xd0] sm:$0xff]
    %v764 = vld [vmem:[%s4 + $0xd8] sm:$0xff]
    %v765 = vld [vmem:[%s4 + $0xe0] sm:$0xff]
    %v766 = vld [vmem:[%s4 + $0xe8] sm:$0xff]
    %v767 = vld [vmem:[%s4 + $0xf0] sm:$0xff]
    %v768 = vld [vmem:[%s4 + $0xf8] sm:$0xff]
    %770 = vset.pattern.permute.xlu0 0
    %771 = vperm.xlu0 %770, %v737
    %v772 = vpop.permute.xlu0 %771
    %775 = vset.pattern.permute.xlu0 0
    %776 = vperm.xlu0 %775, %v738
    %v777 = vpop.permute.xlu0 %776
    %780 = vset.pattern.permute.xlu0 0
    %781 = vperm.xlu0 %780, %v739
    %v782 = vpop.permute.xlu0 %781
    %785 = vset.pattern.permute.xlu0 0
    %786 = vperm.xlu0 %785, %v740
    %v787 = vpop.permute.xlu0 %786
    %790 = vset.pattern.permute.xlu0 0
    %791 = vperm.xlu0 %790, %v741
    %v792 = vpop.permute.xlu0 %791
    %795 = vset.pattern.permute.xlu0 0
    %796 = vperm.xlu0 %795, %v742
    %v797 = vpop.permute.xlu0 %796
    %800 = vset.pattern.permute.xlu0 0
    %801 = vperm.xlu0 %800, %v743
    %v802 = vpop.permute.xlu0 %801
    %805 = vset.pattern.permute.xlu0 0
    %806 = vperm.xlu0 %805, %v744
    %v807 = vpop.permute.xlu0 %806
    %810 = vset.pattern.permute.xlu0 0
    %811 = vperm.xlu0 %810, %v745
    %v812 = vpop.permute.xlu0 %811
    %815 = vset.pattern.permute.xlu0 0
    %816 = vperm.xlu0 %815, %v746
    %v817 = vpop.permute.xlu0 %816
    %820 = vset.pattern.permute.xlu0 0
    %821 = vperm.xlu0 %820, %v747
    %v822 = vpop.permute.xlu0 %821
    %825 = vset.pattern.permute.xlu0 0
    %826 = vperm.xlu0 %825, %v748
    %v827 = vpop.permute.xlu0 %826
    %830 = vset.pattern.permute.xlu0 0
    %831 = vperm.xlu0 %830, %v749
    %v832 = vpop.permute.xlu0 %831
    %835 = vset.pattern.permute.xlu0 0
    %836 = vperm.xlu0 %835, %v750
    %v837 = vpop.permute.xlu0 %836
    %840 = vset.pattern.permute.xlu0 0
    %841 = vperm.xlu0 %840, %v751
    %v842 = vpop.permute.xlu0 %841
    %845 = vset.pattern.permute.xlu0 0
    %846 = vperm.xlu0 %845, %v752
    %v847 = vpop.permute.xlu0 %846
    %850 = vset.pattern.permute.xlu0 0
    %851 = vperm.xlu0 %850, %v753
    %v852 = vpop.permute.xlu0 %851
    %855 = vset.pattern.permute.xlu0 0
    %856 = vperm.xlu0 %855, %v754
    %v857 = vpop.permute.xlu0 %856
    %860 = vset.pattern.permute.xlu0 0
    %861 = vperm.xlu0 %860, %v755
    %v862 = vpop.permute.xlu0 %861
    %865 = vset.pattern.permute.xlu0 0
    %866 = vperm.xlu0 %865, %v756
    %v867 = vpop.permute.xlu0 %866
    %870 = vset.pattern.permute.xlu0 0
    %871 = vperm.xlu0 %870, %v757
    %v872 = vpop.permute.xlu0 %871
    %875 = vset.pattern.permute.xlu0 0
    %876 = vperm.xlu0 %875, %v758
    %v877 = vpop.permute.xlu0 %876
    %880 = vset.pattern.permute.xlu0 0
    %881 = vperm.xlu0 %880, %v759
    %v882 = vpop.permute.xlu0 %881
    %885 = vset.pattern.permute.xlu0 0
    %886 = vperm.xlu0 %885, %v760
    %v887 = vpop.permute.xlu0 %886
    %890 = vset.pattern.permute.xlu0 0
    %891 = vperm.xlu0 %890, %v761
    %v892 = vpop.permute.xlu0 %891
    %895 = vset.pattern.permute.xlu0 0
    %896 = vperm.xlu0 %895, %v762
    %v897 = vpop.permute.xlu0 %896
    %900 = vset.pattern.permute.xlu0 0
    %901 = vperm.xlu0 %900, %v763
    %v902 = vpop.permute.xlu0 %901
    %905 = vset.pattern.permute.xlu0 0
    %906 = vperm.xlu0 %905, %v764
    %v907 = vpop.permute.xlu0 %906
    %910 = vset.pattern.permute.xlu0 0
    %911 = vperm.xlu0 %910, %v765
    %v912 = vpop.permute.xlu0 %911
    %915 = vset.pattern.permute.xlu0 0
    %916 = vperm.xlu0 %915, %v766
    %v917 = vpop.permute.xlu0 %916
    %920 = vset.pattern.permute.xlu0 0
    %921 = vperm.xlu0 %920, %v767
    %v922 = vpop.permute.xlu0 %921
    %925 = vset.pattern.permute.xlu0 0
    %926 = vperm.xlu0 %925, %v768
    %v927 = vpop.permute.xlu0 %926
    %929 = vmatprep.subr.mxu0 %v640
    %930 = vmatpush1.msra.mxu0 %v639
    %931 = vmatprep.subr.mxu0 %v638
    %932 = vmatpush1.msra.mxu0 %v637
    %933 = vmatprep.subr.mxu0 %v636
    %934 = vmatpush1.msra.mxu0 %v635
    %935 = vmatprep.subr.mxu0 %v634
    %936 = vmatpush1.msra.mxu0 %v633
    %937 = vmatprep.subr.mxu0 %v632
    %938 = vmatpush1.msra.mxu0 %v631
    %939 = vmatprep.subr.mxu0 %v630
    %940 = vmatpush1.msra.mxu0 %v629
    %941 = vmatprep.subr.mxu0 %v628
    %942 = vmatpush1.msra.mxu0 %v627
    %943 = vmatprep.subr.mxu0 %v626
    %944 = vmatpush1.msra.mxu0 %v625
    %945 = vmatprep.subr.mxu0 %v624
    %946 = vmatpush1.msra.mxu0 %v623
    %947 = vmatprep.subr.mxu0 %v622
    %948 = vmatpush1.msra.mxu0 %v621
    %949 = vmatprep.subr.mxu0 %v620
    %950 = vmatpush1.msra.mxu0 %v619
    %951 = vmatprep.subr.mxu0 %v618
    %952 = vmatpush1.msra.mxu0 %v617
    %953 = vmatprep.subr.mxu0 %v616
    %954 = vmatpush1.msra.mxu0 %v615
    %955 = vmatprep.subr.mxu0 %v614
    %956 = vmatpush1.msra.mxu0 %v613
    %957 = vmatprep.subr.mxu0 %v612
    %958 = vmatpush1.msra.mxu0 %v611
    %959 = vmatprep.subr.mxu0 %v610
    %960 = vmatpush1.msra.mxu0 %v609
    %961 = vmatprep.subr.mxu0 %v672
    %962 = vmatpush2.msra.mxu0 %v671
    %963 = vmatprep.subr.mxu0 %v670
    %964 = vmatpush2.msra.mxu0 %v669
    %965 = vmatprep.subr.mxu0 %v668
    %966 = vmatpush2.msra.mxu0 %v667
    %967 = vmatprep.subr.mxu0 %v666
    %968 = vmatpush2.msra.mxu0 %v665
    %969 = vmatprep.subr.mxu0 %v664
    %970 = vmatpush2.msra.mxu0 %v663
    %971 = vmatprep.subr.mxu0 %v662
    %972 = vmatpush2.msra.mxu0 %v661
    %973 = vmatprep.subr.mxu0 %v660
    %974 = vmatpush2.msra.mxu0 %v659
    %975 = vmatprep.subr.mxu0 %v658
    %976 = vmatpush2.msra.mxu0 %v657
    %977 = vmatprep.subr.mxu0 %v656
    %978 = vmatpush2.msra.mxu0 %v655
    %979 = vmatprep.subr.mxu0 %v654
    %980 = vmatpush2.msra.mxu0 %v653
    %981 = vmatprep.subr.mxu0 %v652
    %982 = vmatpush2.msra.mxu0 %v651
    %983 = vmatprep.subr.mxu0 %v650
    %984 = vmatpush2.msra.mxu0 %v649
    %985 = vmatprep.subr.mxu0 %v648
    %986 = vmatpush2.msra.mxu0 %v647
    %987 = vmatprep.subr.mxu0 %v646
    %988 = vmatpush2.msra.mxu0 %v645
    %989 = vmatprep.subr.mxu0 %v644
    %990 = vmatpush2.msra.mxu0 %v643
    %991 = vmatprep.subr.mxu0 %v642
    %992 = vmatpush2.msra.mxu0 %v641
    %993 = vmatprep.mubr.f32.mxu0 %v674
    %994 = vmatmul.mubr.f32.gmra.mxu0 %v673
    %v995 = vpop.f32.mrf.mxu0
    %v996 = vadd.f32 %v772, %v995
    %v997 = vpop.f32.mrf.mxu0
    %v998 = vadd.f32 %v772, %v997
    %999 = vmatprep.mubr.f32.mxu0 %v676
    %1000 = vmatmul.mubr.f32.gmra.mxu0 %v675
    %v1001 = vpop.f32.mrf.mxu0
    %v1002 = vadd.f32 %v777, %v1001
    %v1003 = vpop.f32.mrf.mxu0
    %v1004 = vadd.f32 %v777, %v1003
    %1005 = vmatprep.mubr.f32.mxu0 %v678
    %1006 = vmatmul.mubr.f32.gmra.mxu0 %v677
    %v1007 = vpop.f32.mrf.mxu0
    %v1008 = vadd.f32 %v782, %v1007
    %v1009 = vpop.f32.mrf.mxu0
    %v1010 = vadd.f32 %v782, %v1009
    %1011 = vmatprep.mubr.f32.mxu0 %v680
    %1012 = vmatmul.mubr.f32.gmra.mxu0 %v679
    %v1013 = vpop.f32.mrf.mxu0
    %v1014 = vadd.f32 %v787, %v1013
    %v1015 = vpop.f32.mrf.mxu0
    %v1016 = vadd.f32 %v787, %v1015
    %1017 = vmatprep.mubr.f32.mxu0 %v682
    %1018 = vmatmul.mubr.f32.gmra.mxu0 %v681
    %v1019 = vpop.f32.mrf.mxu0
    %v1020 = vadd.f32 %v792, %v1019
    %v1021 = vpop.f32.mrf.mxu0
    %v1022 = vadd.f32 %v792, %v1021
    %1023 = vmatprep.mubr.f32.mxu0 %v684
    %1024 = vmatmul.mubr.f32.gmra.mxu0 %v683
    %v1025 = vpop.f32.mrf.mxu0
    %v1026 = vadd.f32 %v797, %v1025
    %v1027 = vpop.f32.mrf.mxu0
    %v1028 = vadd.f32 %v797, %v1027
    %1029 = vmatprep.mubr.f32.mxu0 %v686
    %1030 = vmatmul.mubr.f32.gmra.mxu0 %v685
    %v1031 = vpop.f32.mrf.mxu0
    %v1032 = vadd.f32 %v802, %v1031
    %v1033 = vpop.f32.mrf.mxu0
    %v1034 = vadd.f32 %v802, %v1033
    %1035 = vmatprep.mubr.f32.mxu0 %v688
    %1036 = vmatmul.mubr.f32.gmra.mxu0 %v687
    %v1037 = vpop.f32.mrf.mxu0
    %v1038 = vadd.f32 %v807, %v1037
    %v1039 = vpop.f32.mrf.mxu0
    %v1040 = vadd.f32 %v807, %v1039
    %1041 = vmatprep.mubr.f32.mxu0 %v690
    %1042 = vmatmul.mubr.f32.gmra.mxu0 %v689
    %v1043 = vpop.f32.mrf.mxu0
    %v1044 = vadd.f32 %v812, %v1043
    %v1045 = vpop.f32.mrf.mxu0
    %v1046 = vadd.f32 %v812, %v1045
    %1047 = vmatprep.mubr.f32.mxu0 %v692
    %1048 = vmatmul.mubr.f32.gmra.mxu0 %v691
    %v1049 = vpop.f32.mrf.mxu0
    %v1050 = vadd.f32 %v817, %v1049
    %v1051 = vpop.f32.mrf.mxu0
    %v1052 = vadd.f32 %v817, %v1051
    %1053 = vmatprep.mubr.f32.mxu0 %v694
    %1054 = vmatmul.mubr.f32.gmra.mxu0 %v693
    %v1055 = vpop.f32.mrf.mxu0
    %v1056 = vadd.f32 %v822, %v1055
    %v1057 = vpop.f32.mrf.mxu0
    %v1058 = vadd.f32 %v822, %v1057
    %1059 = vmatprep.mubr.f32.mxu0 %v696
    %1060 = vmatmul.mubr.f32.gmra.mxu0 %v695
    %v1061 = vpop.f32.mrf.mxu0
    %v1062 = vadd.f32 %v827, %v1061
    %v1063 = vpop.f32.mrf.mxu0
    %v1064 = vadd.f32 %v827, %v1063
    %1065 = vmatprep.mubr.f32.mxu0 %v698
    %1066 = vmatmul.mubr.f32.gmra.mxu0 %v697
    %v1067 = vpop.f32.mrf.mxu0
    %v1068 = vadd.f32 %v832, %v1067
    %v1069 = vpop.f32.mrf.mxu0
    %v1070 = vadd.f32 %v832, %v1069
    %1071 = vmatprep.mubr.f32.mxu0 %v700
    %1072 = vmatmul.mubr.f32.gmra.mxu0 %v699
    %v1073 = vpop.f32.mrf.mxu0
    %v1074 = vadd.f32 %v837, %v1073
    %v1075 = vpop.f32.mrf.mxu0
    %v1076 = vadd.f32 %v837, %v1075
    %1077 = vmatprep.mubr.f32.mxu0 %v702
    %1078 = vmatmul.mubr.f32.gmra.mxu0 %v701
    %v1079 = vpop.f32.mrf.mxu0
    %v1080 = vadd.f32 %v842, %v1079
    %v1081 = vpop.f32.mrf.mxu0
    %v1082 = vadd.f32 %v842, %v1081
    %1083 = vmatprep.mubr.f32.mxu0 %v704
    %1084 = vmatmul.mubr.f32.gmra.mxu0 %v703
    %v1085 = vpop.f32.mrf.mxu0
    %v1086 = vadd.f32 %v847, %v1085
    %v1087 = vpop.f32.mrf.mxu0
    %v1088 = vadd.f32 %v847, %v1087
    %1089 = vmatprep.mubr.f32.mxu0 %v706
    %1090 = vmatmul.mubr.f32.gmra.mxu0 %v705
    %v1091 = vpop.f32.mrf.mxu0
    %v1092 = vadd.f32 %v852, %v1091
    %v1093 = vpop.f32.mrf.mxu0
    %v1094 = vadd.f32 %v852, %v1093
    %1095 = vmatprep.mubr.f32.mxu0 %v708
    %1096 = vmatmul.mubr.f32.gmra.mxu0 %v707
    %v1097 = vpop.f32.mrf.mxu0
    %v1098 = vadd.f32 %v857, %v1097
    %v1099 = vpop.f32.mrf.mxu0
    %v1100 = vadd.f32 %v857, %v1099
    %1101 = vmatprep.mubr.f32.mxu0 %v710
    %1102 = vmatmul.mubr.f32.gmra.mxu0 %v709
    %v1103 = vpop.f32.mrf.mxu0
    %v1104 = vadd.f32 %v862, %v1103
    %v1105 = vpop.f32.mrf.mxu0
    %v1106 = vadd.f32 %v862, %v1105
    %1107 = vmatprep.mubr.f32.mxu0 %v712
    %1108 = vmatmul.mubr.f32.gmra.mxu0 %v711
    %v1109 = vpop.f32.mrf.mxu0
    %v1110 = vadd.f32 %v867, %v1109
    %v1111 = vpop.f32.mrf.mxu0
    %v1112 = vadd.f32 %v867, %v1111
    %1113 = vmatprep.mubr.f32.mxu0 %v714
    %1114 = vmatmul.mubr.f32.gmra.mxu0 %v713
    %v1115 = vpop.f32.mrf.mxu0
    %v1116 = vadd.f32 %v872, %v1115
    %v1117 = vpop.f32.mrf.mxu0
    %v1118 = vadd.f32 %v872, %v1117
    %1119 = vmatprep.mubr.f32.mxu0 %v716
    %1120 = vmatmul.mubr.f32.gmra.mxu0 %v715
    %v1121 = vpop.f32.mrf.mxu0
    %v1122 = vadd.f32 %v877, %v1121
    %v1123 = vpop.f32.mrf.mxu0
    %v1124 = vadd.f32 %v877, %v1123
    %1125 = vmatprep.mubr.f32.mxu0 %v718
    %1126 = vmatmul.mubr.f32.gmra.mxu0 %v717
    %v1127 = vpop.f32.mrf.mxu0
    %v1128 = vadd.f32 %v882, %v1127
    %v1129 = vpop.f32.mrf.mxu0
    %v1130 = vadd.f32 %v882, %v1129
    %1131 = vmatprep.mubr.f32.mxu0 %v720
    %1132 = vmatmul.mubr.f32.gmra.mxu0 %v719
    %v1133 = vpop.f32.mrf.mxu0
    %v1134 = vadd.f32 %v887, %v1133
    %v1135 = vpop.f32.mrf.mxu0
    %v1136 = vadd.f32 %v887, %v1135
    %1137 = vmatprep.mubr.f32.mxu0 %v722
    %1138 = vmatmul.mubr.f32.gmra.mxu0 %v721
    %v1139 = vpop.f32.mrf.mxu0
    %v1140 = vadd.f32 %v892, %v1139
    %v1141 = vpop.f32.mrf.mxu0
    %v1142 = vadd.f32 %v892, %v1141
    %1143 = vmatprep.mubr.f32.mxu0 %v724
    %1144 = vmatmul.mubr.f32.gmra.mxu0 %v723
    %v1145 = vpop.f32.mrf.mxu0
    %v1146 = vadd.f32 %v897, %v1145
    %v1147 = vpop.f32.mrf.mxu0
    %v1148 = vadd.f32 %v897, %v1147
    %1149 = vmatprep.mubr.f32.mxu0 %v726
    %1150 = vmatmul.mubr.f32.gmra.mxu0 %v725
    %v1151 = vpop.f32.mrf.mxu0
    %v1152 = vadd.f32 %v902, %v1151
    %v1153 = vpop.f32.mrf.mxu0
    %v1154 = vadd.f32 %v902, %v1153
    %1155 = vmatprep.mubr.f32.mxu0 %v728
    %1156 = vmatmul.mubr.f32.gmra.mxu0 %v727
    %v1157 = vpop.f32.mrf.mxu0
    %v1158 = vadd.f32 %v907, %v1157
    %v1159 = vpop.f32.mrf.mxu0
    %v1160 = vadd.f32 %v907, %v1159
    %1161 = vmatprep.mubr.f32.mxu0 %v730
    %1162 = vmatmul.mubr.f32.gmra.mxu0 %v729
    %v1163 = vpop.f32.mrf.mxu0
    %v1164 = vadd.f32 %v912, %v1163
    %v1165 = vpop.f32.mrf.mxu0
    %v1166 = vadd.f32 %v912, %v1165
    %1167 = vmatprep.mubr.f32.mxu0 %v732
    %1168 = vmatmul.mubr.f32.gmra.mxu0 %v731
    %v1169 = vpop.f32.mrf.mxu0
    %v1170 = vadd.f32 %v917, %v1169
    %v1171 = vpop.f32.mrf.mxu0
    %v1172 = vadd.f32 %v917, %v1171
    %1173 = vmatprep.mubr.f32.mxu0 %v734
    %1174 = vmatmul.mubr.f32.gmra.mxu0 %v733
    %v1175 = vpop.f32.mrf.mxu0
    %v1176 = vadd.f32 %v922, %v1175
    %v1177 = vpop.f32.mrf.mxu0
    %v1178 = vadd.f32 %v922, %v1177
    %1179 = vmatprep.mubr.f32.mxu0 %v736
    %1180 = vmatmul.mubr.f32.gmra.mxu0 %v735
    %v1181 = vpop.f32.mrf.mxu0
    %v1182 = vadd.f32 %v927, %v1181
    %v1183 = vpop.f32.mrf.mxu0
    %v1184 = vadd.f32 %v927, %v1183
    %1185 = vdwg.mxu0
    %v1186 = vmax.f32 %v996, 0.0
    %v1187 = vmax.f32 %v998, 0.0
    %v1188 = vmax.f32 %v1002, 0.0
    %v1189 = vmax.f32 %v1004, 0.0
    %v1190 = vmax.f32 %v1008, 0.0
    %v1191 = vmax.f32 %v1010, 0.0
    %v1192 = vmax.f32 %v1014, 0.0
    %v1193 = vmax.f32 %v1016, 0.0
    %v1194 = vmax.f32 %v1020, 0.0
    %v1195 = vmax.f32 %v1022, 0.0
    %v1196 = vmax.f32 %v1026, 0.0
    %v1197 = vmax.f32 %v1028, 0.0
    %v1198 = vmax.f32 %v1032, 0.0
    %v1199 = vmax.f32 %v1034, 0.0
    %v1200 = vmax.f32 %v1038, 0.0
    %v1201 = vmax.f32 %v1040, 0.0
    %v1202 = vmax.f32 %v1044, 0.0
    %v1203 = vmax.f32 %v1046, 0.0
    %v1204 = vmax.f32 %v1050, 0.0
    %v1205 = vmax.f32 %v1052, 0.0
    %v1206 = vmax.f32 %v1056, 0.0
    %v1207 = vmax.f32 %v1058, 0.0
    %v1208 = vmax.f32 %v1062, 0.0
    %v1209 = vmax.f32 %v1064, 0.0
    %v1210 = vmax.f32 %v1068, 0.0
    %v1211 = vmax.f32 %v1070, 0.0
    %v1212 = vmax.f32 %v1074, 0.0
    %v1213 = vmax.f32 %v1076, 0.0
    %v1214 = vmax.f32 %v1080, 0.0
    %v1215 = vmax.f32 %v1082, 0.0
    %v1216 = vmax.f32 %v1086, 0.0
    %v1217 = vmax.f32 %v1088, 0.0
    %v1218 = vmax.f32 %v1092, 0.0
    %v1219 = vmax.f32 %v1094, 0.0
    %v1220 = vmax.f32 %v1098, 0.0
    %v1221 = vmax.f32 %v1100, 0.0
    %v1222 = vmax.f32 %v1104, 0.0
    %v1223 = vmax.f32 %v1106, 0.0
    %v1224 = vmax.f32 %v1110, 0.0
    %v1225 = vmax.f32 %v1112, 0.0
    %v1226 = vmax.f32 %v1116, 0.0
    %v1227 = vmax.f32 %v1118, 0.0
    %v1228 = vmax.f32 %v1122, 0.0
    %v1229 = vmax.f32 %v1124, 0.0
    %v1230 = vmax.f32 %v1128, 0.0
    %v1231 = vmax.f32 %v1130, 0.0
    %v1232 = vmax.f32 %v1134, 0.0
    %v1233 = vmax.f32 %v1136, 0.0
    %v1234 = vmax.f32 %v1140, 0.0
    %v1235 = vmax.f32 %v1142, 0.0
    %v1236 = vmax.f32 %v1146, 0.0
    %v1237 = vmax.f32 %v1148, 0.0
    %v1238 = vmax.f32 %v1152, 0.0
    %v1239 = vmax.f32 %v1154, 0.0
    %v1240 = vmax.f32 %v1158, 0.0
    %v1241 = vmax.f32 %v1160, 0.0
    %v1242 = vmax.f32 %v1164, 0.0
    %v1243 = vmax.f32 %v1166, 0.0
    %v1244 = vmax.f32 %v1170, 0.0
    %v1245 = vmax.f32 %v1172, 0.0
    %v1246 = vmax.f32 %v1176, 0.0
    %v1247 = vmax.f32 %v1178, 0.0
    %v1248 = vmax.f32 %v1182, 0.0
    %v1249 = vmax.f32 %v1184, 0.0
    %v1250 = vld [vmem:[%s5] sm:$0xff]
    %v1251 = vld [vmem:[%s5 + $0x8] sm:$0xff]
    %1252 = vmatprep.subr.mxu0 %v1217
    %1253 = vmatpush1.msra.mxu0 %v1216
    %1254 = vmatprep.subr.mxu0 %v1215
    %1255 = vmatpush1.msra.mxu0 %v1214
    %1256 = vmatprep.subr.mxu0 %v1213
    %1257 = vmatpush1.msra.mxu0 %v1212
    %1258 = vmatprep.subr.mxu0 %v1211
    %1259 = vmatpush1.msra.mxu0 %v1210
    %1260 = vmatprep.subr.mxu0 %v1209
    %1261 = vmatpush1.msra.mxu0 %v1208
    %1262 = vmatprep.subr.mxu0 %v1207
    %1263 = vmatpush1.msra.mxu0 %v1206
    %1264 = vmatprep.subr.mxu0 %v1205
    %1265 = vmatpush1.msra.mxu0 %v1204
    %1266 = vmatprep.subr.mxu0 %v1203
    %1267 = vmatpush1.msra.mxu0 %v1202
    %1268 = vmatprep.subr.mxu0 %v1201
    %1269 = vmatpush1.msra.mxu0 %v1200
    %1270 = vmatprep.subr.mxu0 %v1199
    %1271 = vmatpush1.msra.mxu0 %v1198
    %1272 = vmatprep.subr.mxu0 %v1197
    %1273 = vmatpush1.msra.mxu0 %v1196
    %1274 = vmatprep.subr.mxu0 %v1195
    %1275 = vmatpush1.msra.mxu0 %v1194
    %1276 = vmatprep.subr.mxu0 %v1193
    %1277 = vmatpush1.msra.mxu0 %v1192
    %1278 = vmatprep.subr.mxu0 %v1191
    %1279 = vmatpush1.msra.mxu0 %v1190
    %1280 = vmatprep.subr.mxu0 %v1189
    %1281 = vmatpush1.msra.mxu0 %v1188
    %1282 = vmatprep.subr.mxu0 %v1187
    %1283 = vmatpush1.msra.mxu0 %v1186
    %1284 = vmatprep.subr.mxu0 %v1249
    %1285 = vmatpush2.msra.mxu0 %v1248
    %1286 = vmatprep.subr.mxu0 %v1247
    %1287 = vmatpush2.msra.mxu0 %v1246
    %1288 = vmatprep.subr.mxu0 %v1245
    %1289 = vmatpush2.msra.mxu0 %v1244
    %1290 = vmatprep.subr.mxu0 %v1243
    %1291 = vmatpush2.msra.mxu0 %v1242
    %1292 = vmatprep.subr.mxu0 %v1241
    %1293 = vmatpush2.msra.mxu0 %v1240
    %1294 = vmatprep.subr.mxu0 %v1239
    %1295 = vmatpush2.msra.mxu0 %v1238
    %1296 = vmatprep.subr.mxu0 %v1237
    %1297 = vmatpush2.msra.mxu0 %v1236
    %1298 = vmatprep.subr.mxu0 %v1235
    %1299 = vmatpush2.msra.mxu0 %v1234
    %1300 = vmatprep.subr.mxu0 %v1233
    %1301 = vmatpush2.msra.mxu0 %v1232
    %1302 = vmatprep.subr.mxu0 %v1231
    %1303 = vmatpush2.msra.mxu0 %v1230
    %1304 = vmatprep.subr.mxu0 %v1229
    %1305 = vmatpush2.msra.mxu0 %v1228
    %1306 = vmatprep.subr.mxu0 %v1227
    %1307 = vmatpush2.msra.mxu0 %v1226
    %1308 = vmatprep.subr.mxu0 %v1225
    %1309 = vmatpush2.msra.mxu0 %v1224
    %1310 = vmatprep.subr.mxu0 %v1223
    %1311 = vmatpush2.msra.mxu0 %v1222
    %1312 = vmatprep.subr.mxu0 %v1221
    %1313 = vmatpush2.msra.mxu0 %v1220
    %1314 = vmatprep.subr.mxu0 %v1219
    %1315 = vmatpush2.msra.mxu0 %v1218
    %1316 = vmatprep.mubr.f32.mxu0 %v1251
    %1317 = vmatmul.mubr.f32.gmra.mxu0 %v1250
    %v1318 = vpop.f32.mrf.mxu0
    %v1319 = vadd.f32 0.0, %v1318
    %v1320 = vpop.f32.mrf.mxu0
    %v1321 = vadd.f32 0.0, %v1320
    %1322 = vdwg.mxu0
    %v1323 = vadd.f32 %v29, %v1319
    %v1324 = vadd.f32 %v30, %v1321
    %v1325 = vld [vmem:[#allocation2] sm:$0x1]
    %v1327 = vlaneseq
    %v1328 = vshrl.u32 %v1327, 7
    %v1329 = vsub.s32 0, %v1328
    %v1330 = vrot.slane %v1325, %v1329
    %1331 = vset.pattern.permute.xlu0 0
    %1332 = vperm.xlu0 %1331, %v1330
    %v1333 = vpop.permute.xlu0 %1332
    %v1335 = vadd.f32 %v1323, %v1333
    %v1336 = vadd.f32 %v1324, %v1333
    %1337 = vst [vmem:[#allocation3] sm:$0xff] %v1335
    %1338 = vst [vmem:[#allocation3 + $0x8] sm:$0xff] %v1336
    // Predicated region
    $region30: #{tpu_custom_call.1} parent=1 // pred_check
      _
    $region31: #{tpu_custom_call.1} parent=1 // pred_check_branch
      %1340 = sbr.rel (0) target = $region33
    $region32: #{tpu_custom_call.1} parent=1 // pred_region
      %s1342 = ssub.s32 256, 256
      %1343 = vsyncadd [#allocation4], %s1342
      %s1345 = sshll.u32 [#allocation3], 4
      %s1346 = int_to_ptr.vmem [resolvable:$true] %s1345
      %1348 = dma.vmem_to_hbm [thread:$0]  %s1346, 256, %s7, [#allocation4]
    $region33: #{tpu_custom_call.1} parent=1 // pred_fallthru
      _
    // Predicated region
    $region34: #{tpu_custom_call.1} parent=1 // pred_check
      _
    $region35: #{tpu_custom_call.1} parent=1 // pred_check_branch
      %1350 = sbr.rel (0) target = $region37
    $region36: #{tpu_custom_call.1} parent=1 // pred_region
      %1351 = dma.done [#allocation4], 256
    $region37: #{tpu_custom_call.1} parent=1 // pred_fallthru
      _
    %1352 = vsyncpa [#allocation4], 1

</llo_original>
